<compile_context>
chip_gen: v5e
topology: v5e:2x2
jax: 0.10.0
libtpu: 0.0.40
codegen_flags: <defaults>
</compile_context>

<pallas_src>
import functools

import jax
import jax.numpy as jnp
from jax.experimental import pallas as pl
from jax.experimental.pallas import tpu as pltpu

EPS = 1e-06


def _round_up(v: int, m: int) -> int:
    return (v + m - 1) // m * m


def _vn_softplus_kernel(x_ref, w_ref, o_ref, *, negative_slope):
    # x_ref / o_ref: (C, 3, tn) block of the native (B, C, 3, N) array.
    # w_ref: (Cout, C) with Cout == C (or 1 for share_nonlinearity).
    w = w_ref[...].astype(jnp.float32)

    # Per-component (C, tn) planes; compute everything in f32.
    x0 = x_ref[:, 0, :].astype(jnp.float32)
    x1 = x_ref[:, 1, :].astype(jnp.float32)
    x2 = x_ref[:, 2, :].astype(jnp.float32)

    # Channel-mixing Linear (no bias): one small MXU dot per vector component,
    # contraction over C, lane-dense tn as the MXU N-dim.
    d0 = jnp.dot(w, x0, preferred_element_type=jnp.float32)
    d1 = jnp.dot(w, x1, preferred_element_type=jnp.float32)
    d2 = jnp.dot(w, x2, preferred_element_type=jnp.float32)

    # Vector-dim reductions as three element-wise accumulations (no XLU reduce).
    dotprod = x0 * d0 + x1 * d1 + x2 * d2
    x_norm_sq = x0 * x0 + x1 * x1 + x2 * x2
    d_norm_sq = d0 * d0 + d1 * d1 + d2 * d2

    # Exact divides (approx reciprocal caused the previous correctness failure).
    cos_t = dotprod / (jnp.sqrt(x_norm_sq) * jnp.sqrt(d_norm_sq) + EPS)
    scale = dotprod / (d_norm_sq + EPS)

    # mask = cos(acos(t)/2)^2 == (1+t)/2   =>   out = x - (1-ns)*(1-mask)*scale*d
    coeff = ((1.0 - negative_slope) * 0.5) * (1.0 - cos_t) * scale

    o_ref[:, 0, :] = (x0 - coeff * d0).astype(o_ref.dtype)
    o_ref[:, 1, :] = (x1 - coeff * d1).astype(o_ref.dtype)
    o_ref[:, 2, :] = (x2 - coeff * d2).astype(o_ref.dtype)


def vn_softplus(x, weight, negative_slope=0.0, tn=None):
    """x: (B, C, 3, N) (PyTorch NCVN layout).  weight: (Cout, C), Cout in {C, 1}."""
    B, C, V, N = x.shape
    assert V == 3, "VN layers operate on 3-D vector features"
    Cout, Cin = weight.shape
    assert Cin == C, "weight must map C -> Cout over the channel dim"
    assert Cout in (C, 1), "Cout must equal C (or 1 for share_nonlinearity)"

    # Generation-aware scoped VMEM budget (v7x: 64 MiB physical; v5e/v6e: 128 MiB).
    try:
        vmem_cap = int(pltpu.get_tpu_info().vmem_capacity_bytes)
    except Exception:
        vmem_cap = 64 * 1024 * 1024
    vmem_limit = int(min(vmem_cap // 2, 64 * 1024 * 1024))

    # --- lane-tile selection over N ------------------------------------------
    if tn is None:
        if N <= 128:
            tn = N  # full-dim block satisfies the (8,128) rule for small N
        else:
            tn = 2048
            budget = (vmem_limit * 3) // 4
            # per-step VMEM: in+out blocks (C*8*tn*4 B each, v-dim pads 3->8
            # sublanes, double buffered) + ~12 live (C, tn) f32 temporaries.
            while tn > 128 and (4 * C * 8 * tn * 4 + 12 * C * tn * 4) > budget:
                tn //= 2
            # keep >= 8 total grid steps when possible (2 TCs x double buffer on v7x)
            while tn > 256 and B * pl.cdiv(N, tn) < 8:
                tn //= 2
            tn = min(tn, _round_up(N, 128))

    grid = (B, pl.cdiv(N, tn))

    # No wrapper-side layout copies: the (C, 3, tn) view is expressed purely via
    # BlockSpecs on the native (B, C, 3, N) arrays; the ragged last N block's
    # OOB lanes are masked on writeback (math has no cross-lane coupling).
    out = pl.pallas_call(
        functools.partial(_vn_softplus_kernel, negative_slope=float(negative_slope)),
        out_shape=jax.ShapeDtypeStruct((B, C, V, N), x.dtype),
        grid=grid,
        in_specs=[
            pl.BlockSpec((None, C, V, tn), lambda b, n: (b, 0, 0, n)),
            # constant-index block: weight stays resident, not re-fetched per step
            pl.BlockSpec((Cout, C), lambda b, n: (0, 0)),
        ],
        out_specs=pl.BlockSpec((None, C, V, tn), lambda b, n: (b, 0, 0, n)),
        compiler_params=pltpu.CompilerParams(
            dimension_semantics=("parallel", "parallel"),
            vmem_limit_bytes=vmem_limit,
        ),
    )(x, weight)
    return out


def vn_softplus_ref(x, weight, negative_slope=0.0):
    """Pure-JAX reference mirroring the PyTorch forward literally."""
    d = jnp.einsum("oc,bcvn->bovn", weight, x)
    dotprod = jnp.sum(x * d, axis=2, keepdims=True)
    x_norm = jnp.linalg.norm(x, axis=2, keepdims=True)
    d_norm = jnp.linalg.norm(d, axis=2, keepdims=True)
    angle = jnp.arccos(dotprod / (x_norm * d_norm + EPS))
    mask = jnp.cos(angle / 2.0) ** 2
    d_norm_sq = jnp.sum(d * d, axis=2, keepdims=True)
    return negative_slope * x + (1.0 - negative_slope) * (
        mask * x + (1.0 - mask) * (x - dotprod / (d_norm_sq + EPS) * d)
    )


if __name__ == "__main__":
    B, C, V, N = 2, 8, 3, 16
    key = jax.random.PRNGKey(0)
    kx, kw, kw1 = jax.random.split(key, 3)

    x = jax.random.normal(kx, (B, C, V, N), dtype=jnp.float32)
    # nn.Linear(C, Cout, bias=False) default init: U(-1/sqrt(C), 1/sqrt(C))
    bound = 1.0 / (C ** 0.5)
    w_full = jax.random.uniform(kw, (C, C), minval=-bound, maxval=bound, dtype=jnp.float32)
    w_shared = jax.random.uniform(kw1, (1, C), minval=-bound, maxval=bound, dtype=jnp.float32)

    cases = [
        (w_full, 0.0),    # default VNSoftplus
        (w_full, 0.2),    # nonzero negative_slope
        (w_shared, 0.0),  # share_nonlinearity=True (Cout == 1)
    ]
    for w, ns in cases:
        out = jax.block_until_ready(vn_softplus(x, w, negative_slope=ns))
        ref = jax.block_until_ready(vn_softplus_ref(x, w, negative_slope=ns))
        assert out.shape == x.shape and out.dtype == x.dtype
        err = jnp.max(jnp.abs(out - ref))
        assert jnp.allclose(out, ref, rtol=1e-4, atol=1e-5), f"max abs err {err}"
    print("KERNEL_OK")
</pallas_src>

<mosaic_0001>
module attributes {stable_mosaic.version = 11 : i64} {
  func.func @_vn_softplus_kernel(%arg0: i32, %arg1: i32, %arg2: memref<1x8x3x16xf32, #tpu.memory_space<vmem>>, %arg3: memref<8x8xf32, #tpu.memory_space<vmem>>, %arg4: memref<1x8x3x16xf32, #tpu.memory_space<vmem>>) attributes {dimension_semantics = [#tpu.dimension_semantics<parallel>, #tpu.dimension_semantics<parallel>], iteration_bounds = array<i64: 2, 1>, scalar_prefetch = 0 : i64, scratch_operands = 0 : i64, tpu.core_type = #tpu.core_type<tc>, window_params = [{transform_indices = @transform_0, window_bounds = array<i64: 1, 8, 3, 16>}, {pipeline_mode = #tpu.pipeline_mode<synchronous>, transform_indices = @transform_1, window_bounds = array<i64: 8, 8>}, {transform_indices = @transform_2, window_bounds = array<i64: 1, 8, 3, 16>}]} {
    %c0 = arith.constant 0 : index
    %c0_0 = arith.constant 0 : index
    %0 = vector.load %arg3[%c0, %c0_0] : memref<8x8xf32, #tpu.memory_space<vmem>>, vector<8x8xf32>
    %c0_1 = arith.constant 0 : index
    %c0_2 = arith.constant 0 : index
    %c0_3 = arith.constant 0 : index
    %c0_4 = arith.constant 0 : index
    %1 = vector.load %arg2[%c0_1, %c0_2, %c0_3, %c0_4] : memref<1x8x3x16xf32, #tpu.memory_space<vmem>>, vector<1x8x1x16xf32>
    %2 = vector.shape_cast %1 : vector<1x8x1x16xf32> to vector<8x16xf32>
    %c0_5 = arith.constant 0 : index
    %c0_6 = arith.constant 0 : index
    %c1 = arith.constant 1 : index
    %c0_7 = arith.constant 0 : index
    %3 = vector.load %arg2[%c0_5, %c0_6, %c1, %c0_7] : memref<1x8x3x16xf32, #tpu.memory_space<vmem>>, vector<1x8x1x16xf32>
    %4 = vector.shape_cast %3 : vector<1x8x1x16xf32> to vector<8x16xf32>
    %c0_8 = arith.constant 0 : index
    %c0_9 = arith.constant 0 : index
    %c2 = arith.constant 2 : index
    %c0_10 = arith.constant 0 : index
    %5 = vector.load %arg2[%c0_8, %c0_9, %c2, %c0_10] : memref<1x8x3x16xf32, #tpu.memory_space<vmem>>, vector<1x8x1x16xf32>
    %6 = vector.shape_cast %5 : vector<1x8x1x16xf32> to vector<8x16xf32>
    %cst = arith.constant dense<0.000000e+00> : vector<8x16xf32>
    %7 = tpu.matmul %0, %2, %cst {dimension_numbers = #tpu.dot_dimension_numbers<[1], [0], [0], [1], [0, 0, 1, 1], [], []>} : vector<8x8xf32>, vector<8x16xf32>, vector<8x16xf32> -> vector<8x16xf32>
    %cst_11 = arith.constant dense<0.000000e+00> : vector<8x16xf32>
    %8 = tpu.matmul %0, %4, %cst_11 {dimension_numbers = #tpu.dot_dimension_numbers<[1], [0], [0], [1], [0, 0, 1, 1], [], []>} : vector<8x8xf32>, vector<8x16xf32>, vector<8x16xf32> -> vector<8x16xf32>
    %cst_12 = arith.constant dense<0.000000e+00> : vector<8x16xf32>
    %9 = tpu.matmul %0, %6, %cst_12 {dimension_numbers = #tpu.dot_dimension_numbers<[1], [0], [0], [1], [0, 0, 1, 1], [], []>} : vector<8x8xf32>, vector<8x16xf32>, vector<8x16xf32> -> vector<8x16xf32>
    %10 = arith.mulf %2, %7 : vector<8x16xf32>
    %11 = arith.mulf %4, %8 : vector<8x16xf32>
    %12 = arith.addf %10, %11 : vector<8x16xf32>
    %13 = arith.mulf %6, %9 : vector<8x16xf32>
    %14 = arith.addf %12, %13 : vector<8x16xf32>
    %15 = arith.mulf %2, %2 : vector<8x16xf32>
    %16 = arith.mulf %4, %4 : vector<8x16xf32>
    %17 = arith.addf %15, %16 : vector<8x16xf32>
    %18 = arith.mulf %6, %6 : vector<8x16xf32>
    %19 = arith.addf %17, %18 : vector<8x16xf32>
    %20 = arith.mulf %7, %7 : vector<8x16xf32>
    %21 = arith.mulf %8, %8 : vector<8x16xf32>
    %22 = arith.addf %20, %21 : vector<8x16xf32>
    %23 = arith.mulf %9, %9 : vector<8x16xf32>
    %24 = arith.addf %22, %23 : vector<8x16xf32>
    %25 = math.sqrt %19 : vector<8x16xf32>
    %26 = math.sqrt %24 : vector<8x16xf32>
    %27 = arith.mulf %25, %26 : vector<8x16xf32>
    %cst_13 = arith.constant 9.99999997E-7 : f32
    %28 = vector.broadcast %cst_13 : f32 to vector<8x16xf32>
    %29 = arith.addf %27, %28 : vector<8x16xf32>
    %30 = arith.divf %14, %29 : vector<8x16xf32>
    %cst_14 = arith.constant 9.99999997E-7 : f32
    %31 = vector.broadcast %cst_14 : f32 to vector<8x16xf32>
    %32 = arith.addf %24, %31 : vector<8x16xf32>
    %33 = arith.divf %14, %32 : vector<8x16xf32>
    %cst_15 = arith.constant 1.000000e+00 : f32
    %34 = vector.broadcast %cst_15 : f32 to vector<8x16xf32>
    %35 = arith.subf %34, %30 : vector<8x16xf32>
    %cst_16 = arith.constant 5.000000e-01 : f32
    %36 = vector.broadcast %cst_16 : f32 to vector<8x16xf32>
    %37 = arith.mulf %36, %35 : vector<8x16xf32>
    %38 = arith.mulf %37, %33 : vector<8x16xf32>
    %39 = arith.mulf %38, %7 : vector<8x16xf32>
    %40 = arith.subf %2, %39 : vector<8x16xf32>
    %c0_17 = arith.constant 0 : index
    %c0_18 = arith.constant 0 : index
    %c0_19 = arith.constant 0 : index
    %c0_20 = arith.constant 0 : index
    %41 = vector.load %arg4[%c0_17, %c0_18, %c0_19, %c0_20] : memref<1x8x3x16xf32, #tpu.memory_space<vmem>>, vector<1x8x1x16xf32>
    %42 = vector.shape_cast %41 : vector<1x8x1x16xf32> to vector<8x16xf32>
    %43 = vector.shape_cast %40 : vector<8x16xf32> to vector<1x8x1x16xf32>
    tpu.vector_store %arg4[%c0_17, %c0_18, %c0_19, %c0_20], %43 {strides = array<i32>} : memref<1x8x3x16xf32, #tpu.memory_space<vmem>>, vector<1x8x1x16xf32>,
    %44 = arith.mulf %38, %8 : vector<8x16xf32>
    %45 = arith.subf %4, %44 : vector<8x16xf32>
    %c0_21 = arith.constant 0 : index
    %c0_22 = arith.constant 0 : index
    %c1_23 = arith.constant 1 : index
    %c0_24 = arith.constant 0 : index
    %46 = vector.load %arg4[%c0_21, %c0_22, %c1_23, %c0_24] : memref<1x8x3x16xf32, #tpu.memory_space<vmem>>, vector<1x8x1x16xf32>
    %47 = vector.shape_cast %46 : vector<1x8x1x16xf32> to vector<8x16xf32>
    %48 = vector.shape_cast %45 : vector<8x16xf32> to vector<1x8x1x16xf32>
    tpu.vector_store %arg4[%c0_21, %c0_22, %c1_23, %c0_24], %48 {strides = array<i32>} : memref<1x8x3x16xf32, #tpu.memory_space<vmem>>, vector<1x8x1x16xf32>,
    %49 = arith.mulf %38, %9 : vector<8x16xf32>
    %50 = arith.subf %6, %49 : vector<8x16xf32>
    %c0_25 = arith.constant 0 : index
    %c0_26 = arith.constant 0 : index
    %c2_27 = arith.constant 2 : index
    %c0_28 = arith.constant 0 : index
    %51 = vector.load %arg4[%c0_25, %c0_26, %c2_27, %c0_28] : memref<1x8x3x16xf32, #tpu.memory_space<vmem>>, vector<1x8x1x16xf32>
    %52 = vector.shape_cast %51 : vector<1x8x1x16xf32> to vector<8x16xf32>
    %53 = vector.shape_cast %50 : vector<8x16xf32> to vector<1x8x1x16xf32>
    tpu.vector_store %arg4[%c0_25, %c0_26, %c2_27, %c0_28], %53 {strides = array<i32>} : memref<1x8x3x16xf32, #tpu.memory_space<vmem>>, vector<1x8x1x16xf32>,
    return
  }
  func.func @transform_0(%arg0: i32, %arg1: i32) -> (i32, i32, i32, i32) {
    %c0_i32 = arith.constant 0 : i32
    %c0_i32_0 = arith.constant 0 : i32
    %c0_i32_1 = arith.constant 0 : i32
    return %arg0, %c0_i32, %c0_i32_0, %arg1 : i32, i32, i32, i32
  }
  func.func @transform_1(%arg0: i32, %arg1: i32) -> (i32, i32) {
    %c0_i32 = arith.constant 0 : i32
    %c0_i32_0 = arith.constant 0 : i32
    %c0_i32_1 = arith.constant 0 : i32
    return %c0_i32, %c0_i32_0 : i32, i32
  }
  func.func @transform_2(%arg0: i32, %arg1: i32) -> (i32, i32, i32, i32) {
    %c0_i32 = arith.constant 0 : i32
    %c0_i32_0 = arith.constant 0 : i32
    %c0_i32_1 = arith.constant 0 : i32
    return %arg0, %c0_i32, %c0_i32_0, %arg1 : i32, i32, i32, i32
  }
}

</mosaic_0001>

<llo_original>
// kernel: tpu_custom_call.1
$region0: #{tpu_custom_call.1}
  #allocation0 [shape = 'u32[]', space=smem, size = 0x4, offset = 0x4, fixed_abs, tag = 'smem constant byte address 0x4 - core index']
  #allocation1 [shape = 'u32[72,128]{1,0:T(1,128)}', space=vmem, size = 0x9000, scoped, tag = 'internal scratch']
  %s0 = inlined_call_operand.vmem [shape: f32[2,8,3,16], index: 0, kind: input, shape index: {}]
  %s1 = inlined_call_operand.vmem [shape: f32[8,8], index: 1, kind: input, shape index: {}]
  %s2 = inlined_call_operand.vmem [shape: f32[2,8,3,16], index: 2, kind: output, shape index: {}]
  %s3 = sld [smem:[#allocation0]]
  $region41: #{tpu_custom_call.1} parent=0
    _
  %s5 = ssub.s32 1, %s3
  %s6 = scalar_select 0, %s5, %s3
  loop: start=0, step=1, limit=4
  $region2: #{tpu_custom_call.1} parent=0 // loop_pre_header
    _
  $region3: #{tpu_custom_call.1} parent=0 // loop_header
    %s8 = sphi 0, %s12
    %p9 = scmp.ge.s32.totalorder %s8, 4
    %s15 = sphi 0, %s27
    %s16 = sphi 0, %s23
    %s17 = sphi 0, %s15
    %s18 = sphi 0, %s16
    %s19 = sphi 0, %s17
    %s20 = sphi 0, %s18
    %s32 = sphi 0, %s34
    %s35 = sphi 0, %s32
    %s36 = sphi 0, %s35
    %s52 = sphi 0, %s36
    %s56 = sphi 0, %s56
    %s58 = sphi 0, %s56
    %s59 = sphi 0, %s58
    %s73 = sphi 0, %s59
    %s81 = sphi 0, %s83
    %s84 = sphi 0, %s81
    %s85 = sphi 0, %s84
    %s101 = sphi 0, %s85
  $region4: #{tpu_custom_call.1} parent=0 // loop_header_branch
    %11 = sbr.rel (%p9) target = $region8
  $region5: #{tpu_custom_call.1} parent=0 // loop_body
    %s13 = ssub.s32 %s8, 1
    %s14 = ssub.s32 %s8, 2
    %s21 = sadd.s32 1, %s16
    %p22 = scmp.ge.s32.totalorder %s21, 1
    %s23 = scalar_select %p22, 0, %s21
    %s24 = sadd.s32 1, %s15
    %s25 = scalar_select %p22, %s24, %s15
    %p26 = scmp.ge.s32.totalorder %s25, 2
    %s27 = scalar_select %p26, 0, %s25
    %s28 = ssub.s32 %s15, %s27
    %s29 = ssub.s32 %s16, %s23
    %s30 = sor.u32 %s28, %s29
    %p31 = scmp.eq.s32.totalorder %s30, 0
    %s33 = sadd.s32 %s32, 1
    %s34 = scalar_select %p31, %s32, %s33
    %p37 = pneg %p31
    %p38 = scmp.eq.s32.totalorder %s8, 1
    %p39 = por %p37, %p38
    %p40 = scmp.ne.s32.totalorder %s32, %s35
    %p41 = scmp.eq.s32.totalorder %s8, 0
    %p42 = por %p40, %p41
    %p43 = scmp.ne.s32.totalorder %s32, %s35
    %p44 = scmp.eq.s32.totalorder %s13, 1
    %p45 = por %p43, %p44
    %p46 = scmp.ne.s32.totalorder %s35, %s36
    %p47 = scmp.eq.s32.totalorder %s13, 0
    %p48 = por %p46, %p47
    %p49 = scmp.ne.s32.totalorder %s35, %s36
    %p50 = scmp.eq.s32.totalorder %s14, 1
    %p51 = por %p49, %p50
    %p53 = scmp.ne.s32.totalorder %s36, %s52
    %p54 = scmp.eq.s32.totalorder %s14, 0
    %p55 = por %p53, %p54
    %s57 = sadd.s32 %s56, 1
    %p60 = scmp.eq.s32.totalorder %s8, 1
    %p61 = scmp.ne.s32.totalorder %s56, %s58
    %p62 = scmp.eq.s32.totalorder %s8, 0
    %p63 = por %p61, %p62
    %p64 = scmp.ne.s32.totalorder %s56, %s58
    %p65 = scmp.eq.s32.totalorder %s13, 1
    %p66 = por %p64, %p65
    %p67 = scmp.ne.s32.totalorder %s58, %s59
    %p68 = scmp.eq.s32.totalorder %s13, 0
    %p69 = por %p67, %p68
    %p70 = scmp.ne.s32.totalorder %s58, %s59
    %p71 = scmp.eq.s32.totalorder %s14, 1
    %p72 = por %p70, %p71
    %p74 = scmp.ne.s32.totalorder %s59, %s73
    %p75 = scmp.eq.s32.totalorder %s14, 0
    %p76 = por %p74, %p75
    %s77 = ssub.s32 %s15, %s27
    %s78 = ssub.s32 %s16, %s23
    %s79 = sor.u32 %s77, %s78
    %p80 = scmp.eq.s32.totalorder %s79, 0
    %s82 = sadd.s32 %s81, 1
    %s83 = scalar_select %p80, %s81, %s82
    %p86 = pneg %p80
    %p87 = scmp.eq.s32.totalorder %s8, 1
    %p88 = por %p86, %p87
    %p89 = scmp.ne.s32.totalorder %s81, %s84
    %p90 = scmp.eq.s32.totalorder %s8, 0
    %p91 = por %p89, %p90
    %p92 = scmp.ne.s32.totalorder %s81, %s84
    %p93 = scmp.eq.s32.totalorder %s13, 1
    %p94 = por %p92, %p93
    %p95 = scmp.ne.s32.totalorder %s84, %s85
    %p96 = scmp.eq.s32.totalorder %s13, 0
    %p97 = por %p95, %p96
    %p98 = scmp.ne.s32.totalorder %s84, %s85
    %p99 = scmp.eq.s32.totalorder %s14, 1
    %p100 = por %p98, %p99
    %p102 = scmp.ne.s32.totalorder %s85, %s101
    %p103 = scmp.eq.s32.totalorder %s14, 0
    %p104 = por %p102, %p103
    %p105 = scmp.le.s32.totalorder 1, %s8
    %p106 = scmp.lt.s32.totalorder %s8, 3
    %p107 = pnand %p105, %p106
    %p108 = pneg %p107
    // Predicated region
    $region9: #{tpu_custom_call.1} parent=5 // pred_check
      _
    $region10: #{tpu_custom_call.1} parent=5 // pred_check_branch
      %110 = sbr.rel (%p107) target = $region12
    $region11: #{tpu_custom_call.1} parent=5 // pred_region
      %s111 = ssub.s32 %s8, 1
      // Predicated region
      $region13: #{tpu_custom_call.1} parent=11 // pred_check
        %p112 = pneg %p69
      $region14: #{tpu_custom_call.1} parent=11 // pred_check_branch
        %114 = sbr.rel (%p112) target = $region16
      $region15: #{tpu_custom_call.1} parent=11 // pred_region
        _
      $region16: #{tpu_custom_call.1} parent=11 // pred_fallthru
        _
    $region12: #{tpu_custom_call.1} parent=5 // pred_fallthru
      _
    %p115 = scmp.lt.s32.totalorder %s8, 2
    // Predicated region
    $region17: #{tpu_custom_call.1} parent=5 // pred_check
      %p116 = pneg %p115
    $region18: #{tpu_custom_call.1} parent=5 // pred_check_branch
      %118 = sbr.rel (%p116) target = $region20
    $region19: #{tpu_custom_call.1} parent=5 // pred_region
      // Predicated region
      $region21: #{tpu_custom_call.1} parent=19 // pred_check
        %p119 = pneg %p42
      $region22: #{tpu_custom_call.1} parent=19 // pred_check_branch
        %121 = sbr.rel (%p119) target = $region24
      $region23: #{tpu_custom_call.1} parent=19 // pred_region
        %p122 = scmp.lt.s32.totalorder %s15, 1
        %s123 = scalar_select %p122, %s15, 1
        %p124 = scmp.lt.s32.totalorder %s16, 0
        %s125 = scalar_select %p124, %s16, 0
        %s126 = smul.addr %s123, 8
        %s127 = sadd.s32 %s125, %s126
        %s128 = smul.addr %s127, 4
        %s129 = scalar_lea.vmem %s0, %s128
      $region24: #{tpu_custom_call.1} parent=19 // pred_fallthru
        _
    $region20: #{tpu_custom_call.1} parent=5 // pred_fallthru
      _
    %p130 = scmp.le.s32.totalorder 1, %s8
    %p131 = scmp.lt.s32.totalorder %s8, 3
    %p132 = pnand %p130, %p131
    %p133 = pneg %p132
    // Predicated region
    $region25: #{tpu_custom_call.1} parent=5 // pred_check
      _
    $region26: #{tpu_custom_call.1} parent=5 // pred_check_branch
      %135 = sbr.rel (%p132) target = $region28
    $region27: #{tpu_custom_call.1} parent=5 // pred_region
      %s136 = ssub.s32 %s8, 1
      %p137 = scmp.lt.s32.totalorder %s17, 1
      %s138 = scalar_select %p137, %s17, 1
      %p139 = scmp.lt.s32.totalorder %s18, 0
      %s140 = scalar_select %p139, %s18, 0
      %s141 = smul.addr %s138, 8
      %s142 = sadd.s32 %s140, %s141
      %s143 = smul.addr %s142, 4
      %s144 = scalar_lea.vmem %s0, %s143
      %p145 = pneg %p48
      %p146 = pneg %p45
      %p147 = pneg %p69
      %p148 = pneg %p66
      %p149 = pneg %p97
      %p150 = pneg %p94
      %p151 = scmp.lt.s32.totalorder %s17, 1
      %s152 = scalar_select %p151, %s17, 1
      %p153 = scmp.lt.s32.totalorder %s18, 0
      %s154 = scalar_select %p153, %s18, 0
      %s155 = smul.addr %s152, 8
      %s156 = sadd.s32 %s154, %s155
      %s157 = smul.addr %s156, 4
      %s158 = scalar_lea.vmem %s2, %s157
      %p159 = scmp.lt.s32.totalorder %s17, 1
      %s160 = scalar_select %p159, %s17, 1
      %p161 = scmp.lt.s32.totalorder %s18, 0
      %s162 = scalar_select %p161, %s18, 0
      %s163 = smul.addr %s160, 8
      %s164 = sadd.s32 %s162, %s163
      %s165 = smul.addr %s164, 4
      %s166 = scalar_lea.vmem %s0, %s165
      %p167 = scmp.lt.s32.totalorder %s17, 1
      %s168 = scalar_select %p167, %s17, 1
      %p169 = scmp.lt.s32.totalorder %s18, 0
      %s170 = scalar_select %p169, %s18, 0
      %s171 = smul.addr %s168, 8
      %s172 = sadd.s32 %s170, %s171
      %s173 = smul.addr %s172, 4
      %s174 = scalar_lea.vmem %s2, %s173
      %v175 = vld [vmem:[%s1] sm:$0xff]
      %v176 = vld [vmem:[%s166] sm:$0x1]
      %v177 = vld [vmem:[%s166 + $0x4] sm:$0x1]
      %v178 = vld [vmem:[%s166 + $0x8] sm:$0x1]
      %v179 = vld [vmem:[%s166 + $0xc] sm:$0x1]
      %v180 = vld [vmem:[%s166 + $0x10] sm:$0x1]
      %v181 = vld [vmem:[%s166 + $0x14] sm:$0x1]
      %v182 = vld [vmem:[%s166 + $0x18] sm:$0x1]
      %v183 = vld [vmem:[%s166 + $0x1c] sm:$0x1]
      %v184 = vld [vmem:[%s166 + $0x1] sm:$0x1]
      %v185 = vld [vmem:[%s166 + $0x5] sm:$0x1]
      %v186 = vld [vmem:[%s166 + $0x9] sm:$0x1]
      %v187 = vld [vmem:[%s166 + $0xd] sm:$0x1]
      %v188 = vld [vmem:[%s166 + $0x11] sm:$0x1]
      %v189 = vld [vmem:[%s166 + $0x15] sm:$0x1]
      %v190 = vld [vmem:[%s166 + $0x19] sm:$0x1]
      %v191 = vld [vmem:[%s166 + $0x1d] sm:$0x1]
      %v192 = vld [vmem:[%s166 + $0x2] sm:$0x1]
      %v193 = vld [vmem:[%s166 + $0x6] sm:$0x1]
      %v194 = vld [vmem:[%s166 + $0xa] sm:$0x1]
      %v195 = vld [vmem:[%s166 + $0xe] sm:$0x1]
      %v196 = vld [vmem:[%s166 + $0x12] sm:$0x1]
      %v197 = vld [vmem:[%s166 + $0x16] sm:$0x1]
      %v198 = vld [vmem:[%s166 + $0x1a] sm:$0x1]
      %v199 = vld [vmem:[%s166 + $0x1e] sm:$0x1]
      %v208 = vrot.slane %v177, 7
      %vm209 = vcmask 1041409
      %v210 = vsel %vm209, %v208, %v176
      %v211 = vrot.slane %v178, 6
      %vm212 = vcmask 1042434
      %v213 = vsel %vm212, %v211, %v210
      %v214 = vrot.slane %v179, 5
      %vm215 = vcmask 1043459
      %v216 = vsel %vm215, %v214, %v213
      %v217 = vrot.slane %v180, 4
      %vm218 = vcmask 1044484
      %v219 = vsel %vm218, %v217, %v216
      %v220 = vrot.slane %v181, 3
      %vm221 = vcmask 1045509
      %v222 = vsel %vm221, %v220, %v219
      %v223 = vrot.slane %v182, 2
      %vm224 = vcmask 1046534
      %v225 = vsel %vm224, %v223, %v222
      %v226 = vrot.slane %v183, 1
      %vm227 = vcmask 1047559
      %v228 = vsel %vm227, %v226, %v225
      %vm230 = vcmask 64512
      %v232 = vsel %vm230, %v175, 0
      %234 = vmatpush.msra.mxu0 0.0
      %235 = vmatpush.msra.mxu0 0.0
      %236 = vmatpush.msra.mxu0 0.0
      %237 = vmatpush.msra.mxu0 0.0
      %238 = vmatpush.msra.mxu0 0.0
      %239 = vmatpush.msra.mxu0 0.0
      %240 = vmatpush.msra.mxu0 0.0
      %241 = vmatpush.msra.mxu0 0.0
      %242 = vmatpush.msra.mxu0 0.0
      %243 = vmatpush.msra.mxu0 0.0
      %244 = vmatpush.msra.mxu0 0.0
      %245 = vmatpush.msra.mxu0 0.0
      %246 = vmatpush.msra.mxu0 0.0
      %247 = vmatpush.msra.mxu0 0.0
      %248 = vmatpush.msra.mxu0 0.0
      %249 = vmatpush.msra.mxu0 %v228
      %250 = vmatmul.f32.gmra.mxu0 %v232
      %v251 = vpop.f32.mrf.mxu0
      %v252 = vadd.f32 0.0, %v251
      %253 = vdwg.mxu0
      %v262 = vrot.slane %v185, 7
      %v263 = vsel %vm209, %v262, %v184
      %v264 = vrot.slane %v186, 6
      %v265 = vsel %vm212, %v264, %v263
      %v266 = vrot.slane %v187, 5
      %v267 = vsel %vm215, %v266, %v265
      %v268 = vrot.slane %v188, 4
      %v269 = vsel %vm218, %v268, %v267
      %v270 = vrot.slane %v189, 3
      %v271 = vsel %vm221, %v270, %v269
      %v272 = vrot.slane %v190, 2
      %v273 = vsel %vm224, %v272, %v271
      %v274 = vrot.slane %v191, 1
      %v275 = vsel %vm227, %v274, %v273
      %277 = vmatpush.msra.mxu0 0.0
      %278 = vmatpush.msra.mxu0 0.0
      %279 = vmatpush.msra.mxu0 0.0
      %280 = vmatpush.msra.mxu0 0.0
      %281 = vmatpush.msra.mxu0 0.0
      %282 = vmatpush.msra.mxu0 0.0
      %283 = vmatpush.msra.mxu0 0.0
      %284 = vmatpush.msra.mxu0 0.0
      %285 = vmatpush.msra.mxu0 0.0
      %286 = vmatpush.msra.mxu0 0.0
      %287 = vmatpush.msra.mxu0 0.0
      %288 = vmatpush.msra.mxu0 0.0
      %289 = vmatpush.msra.mxu0 0.0
      %290 = vmatpush.msra.mxu0 0.0
      %291 = vmatpush.msra.mxu0 0.0
      %292 = vmatpush.msra.mxu0 %v275
      %293 = vmatmul.f32.gmra.mxu0 %v232
      %v294 = vpop.f32.mrf.mxu0
      %v295 = vadd.f32 0.0, %v294
      %296 = vdwg.mxu0
      %v305 = vrot.slane %v193, 7
      %v306 = vsel %vm209, %v305, %v192
      %v307 = vrot.slane %v194, 6
      %v308 = vsel %vm212, %v307, %v306
      %v309 = vrot.slane %v195, 5
      %v310 = vsel %vm215, %v309, %v308
      %v311 = vrot.slane %v196, 4
      %v312 = vsel %vm218, %v311, %v310
      %v313 = vrot.slane %v197, 3
      %v314 = vsel %vm221, %v313, %v312
      %v315 = vrot.slane %v198, 2
      %v316 = vsel %vm224, %v315, %v314
      %v317 = vrot.slane %v199, 1
      %v318 = vsel %vm227, %v317, %v316
      %320 = vmatpush.msra.mxu0 0.0
      %321 = vmatpush.msra.mxu0 0.0
      %322 = vmatpush.msra.mxu0 0.0
      %323 = vmatpush.msra.mxu0 0.0
      %324 = vmatpush.msra.mxu0 0.0
      %325 = vmatpush.msra.mxu0 0.0
      %326 = vmatpush.msra.mxu0 0.0
      %327 = vmatpush.msra.mxu0 0.0
      %328 = vmatpush.msra.mxu0 0.0
      %329 = vmatpush.msra.mxu0 0.0
      %330 = vmatpush.msra.mxu0 0.0
      %331 = vmatpush.msra.mxu0 0.0
      %332 = vmatpush.msra.mxu0 0.0
      %333 = vmatpush.msra.mxu0 0.0
      %334 = vmatpush.msra.mxu0 0.0
      %335 = vmatpush.msra.mxu0 %v318
      %336 = vmatmul.f32.gmra.mxu0 %v232
      %v337 = vpop.f32.mrf.mxu0
      %v338 = vadd.f32 0.0, %v337
      %339 = vdwg.mxu0
      %v341 = vrot.slane %v252, 1
      %v342 = vrot.slane %v252, 2
      %v343 = vrot.slane %v252, 3
      %v344 = vrot.slane %v252, 4
      %v345 = vrot.slane %v252, 5
      %v346 = vrot.slane %v252, 6
      %v347 = vrot.slane %v252, 7
      %v356 = vmul.f32 %v176, %v252
      %v357 = vmul.f32 %v177, %v341
      %v358 = vmul.f32 %v178, %v342
      %v359 = vmul.f32 %v179, %v343
      %v360 = vmul.f32 %v180, %v344
      %v361 = vmul.f32 %v181, %v345
      %v362 = vmul.f32 %v182, %v346
      %v363 = vmul.f32 %v183, %v347
      %v365 = vrot.slane %v295, 1
      %v366 = vrot.slane %v295, 2
      %v367 = vrot.slane %v295, 3
      %v368 = vrot.slane %v295, 4
      %v369 = vrot.slane %v295, 5
      %v370 = vrot.slane %v295, 6
      %v371 = vrot.slane %v295, 7
      %v380 = vmul.f32 %v184, %v295
      %v381 = vmul.f32 %v185, %v365
      %v382 = vmul.f32 %v186, %v366
      %v383 = vmul.f32 %v187, %v367
      %v384 = vmul.f32 %v188, %v368
      %v385 = vmul.f32 %v189, %v369
      %v386 = vmul.f32 %v190, %v370
      %v387 = vmul.f32 %v191, %v371
      %v388 = vadd.f32 %v356, %v380
      %v389 = vadd.f32 %v357, %v381
      %v390 = vadd.f32 %v358, %v382
      %v391 = vadd.f32 %v359, %v383
      %v392 = vadd.f32 %v360, %v384
      %v393 = vadd.f32 %v361, %v385
      %v394 = vadd.f32 %v362, %v386
      %v395 = vadd.f32 %v363, %v387
      %v397 = vrot.slane %v338, 1
      %v398 = vrot.slane %v338, 2
      %v399 = vrot.slane %v338, 3
      %v400 = vrot.slane %v338, 4
      %v401 = vrot.slane %v338, 5
      %v402 = vrot.slane %v338, 6
      %v403 = vrot.slane %v338, 7
      %v412 = vmul.f32 %v192, %v338
      %v413 = vmul.f32 %v193, %v397
      %v414 = vmul.f32 %v194, %v398
      %v415 = vmul.f32 %v195, %v399
      %v416 = vmul.f32 %v196, %v400
      %v417 = vmul.f32 %v197, %v401
      %v418 = vmul.f32 %v198, %v402
      %v419 = vmul.f32 %v199, %v403
      %v420 = vadd.f32 %v388, %v412
      %v421 = vadd.f32 %v389, %v413
      %v422 = vadd.f32 %v390, %v414
      %v423 = vadd.f32 %v391, %v415
      %v424 = vadd.f32 %v392, %v416
      %v425 = vadd.f32 %v393, %v417
      %v426 = vadd.f32 %v394, %v418
      %v427 = vadd.f32 %v395, %v419
      %v428 = vmul.f32 %v176, %v176
      %v429 = vmul.f32 %v177, %v177
      %v430 = vmul.f32 %v178, %v178
      %v431 = vmul.f32 %v179, %v179
      %v432 = vmul.f32 %v180, %v180
      %v433 = vmul.f32 %v181, %v181
      %v434 = vmul.f32 %v182, %v182
      %v435 = vmul.f32 %v183, %v183
      %v436 = vmul.f32 %v184, %v184
      %v437 = vmul.f32 %v185, %v185
      %v438 = vmul.f32 %v186, %v186
      %v439 = vmul.f32 %v187, %v187
      %v440 = vmul.f32 %v188, %v188
      %v441 = vmul.f32 %v189, %v189
      %v442 = vmul.f32 %v190, %v190
      %v443 = vmul.f32 %v191, %v191
      %v444 = vadd.f32 %v428, %v436
      %v445 = vadd.f32 %v429, %v437
      %v446 = vadd.f32 %v430, %v438
      %v447 = vadd.f32 %v431, %v439
      %v448 = vadd.f32 %v432, %v440
      %v449 = vadd.f32 %v433, %v441
      %v450 = vadd.f32 %v434, %v442
      %v451 = vadd.f32 %v435, %v443
      %v452 = vmul.f32 %v192, %v192
      %v453 = vmul.f32 %v193, %v193
      %v454 = vmul.f32 %v194, %v194
      %v455 = vmul.f32 %v195, %v195
      %v456 = vmul.f32 %v196, %v196
      %v457 = vmul.f32 %v197, %v197
      %v458 = vmul.f32 %v198, %v198
      %v459 = vmul.f32 %v199, %v199
      %v460 = vadd.f32 %v444, %v452
      %v461 = vadd.f32 %v445, %v453
      %v462 = vadd.f32 %v446, %v454
      %v463 = vadd.f32 %v447, %v455
      %v464 = vadd.f32 %v448, %v456
      %v465 = vadd.f32 %v449, %v457
      %v466 = vadd.f32 %v450, %v458
      %v467 = vadd.f32 %v451, %v459
      %v468 = vmul.f32 %v252, %v252
      %v469 = vmul.f32 %v295, %v295
      %v470 = vadd.f32 %v468, %v469
      %v471 = vmul.f32 %v338, %v338
      %v472 = vadd.f32 %v470, %v471
      %v473 = vrsqrt.pop %v460
      %v474 = vmul.f32 %v473, %v460
      %v475 = vmul.f32 %v474, %v473
      %v476 = vmul.f32 0.5, %v475
      %v477 = vsub.f32 1.5, %v476
      %v478 = vmul.f32 %v473, %v477
      %v479 = vmul.f32 %v460, %v478
      %vm480 = vcmp.eq.f32.partialorder %v460, inf
      %v481 = vsel %vm480, %v460, %v479
      %vm482 = vcmp.eq.f32.partialorder %v460, 0.0
      %v483 = vand.u32 %v460, 2147483648
      %v484 = vsel %vm482, %v483, %v481
      %v485 = vrsqrt.pop %v461
      %v486 = vmul.f32 %v485, %v461
      %v487 = vmul.f32 %v486, %v485
      %v488 = vmul.f32 0.5, %v487
      %v489 = vsub.f32 1.5, %v488
      %v490 = vmul.f32 %v485, %v489
      %v491 = vmul.f32 %v461, %v490
      %vm492 = vcmp.eq.f32.partialorder %v461, inf
      %v493 = vsel %vm492, %v461, %v491
      %vm494 = vcmp.eq.f32.partialorder %v461, 0.0
      %v495 = vand.u32 %v461, 2147483648
      %v496 = vsel %vm494, %v495, %v493
      %v497 = vrsqrt.pop %v462
      %v498 = vmul.f32 %v497, %v462
      %v499 = vmul.f32 %v498, %v497
      %v500 = vmul.f32 0.5, %v499
      %v501 = vsub.f32 1.5, %v500
      %v502 = vmul.f32 %v497, %v501
      %v503 = vmul.f32 %v462, %v502
      %vm504 = vcmp.eq.f32.partialorder %v462, inf
      %v505 = vsel %vm504, %v462, %v503
      %vm506 = vcmp.eq.f32.partialorder %v462, 0.0
      %v507 = vand.u32 %v462, 2147483648
      %v508 = vsel %vm506, %v507, %v505
      %v509 = vrsqrt.pop %v463
      %v510 = vmul.f32 %v509, %v463
      %v511 = vmul.f32 %v510, %v509
      %v512 = vmul.f32 0.5, %v511
      %v513 = vsub.f32 1.5, %v512
      %v514 = vmul.f32 %v509, %v513
      %v515 = vmul.f32 %v463, %v514
      %vm516 = vcmp.eq.f32.partialorder %v463, inf
      %v517 = vsel %vm516, %v463, %v515
      %vm518 = vcmp.eq.f32.partialorder %v463, 0.0
      %v519 = vand.u32 %v463, 2147483648
      %v520 = vsel %vm518, %v519, %v517
      %v521 = vrsqrt.pop %v464
      %v522 = vmul.f32 %v521, %v464
      %v523 = vmul.f32 %v522, %v521
      %v524 = vmul.f32 0.5, %v523
      %v525 = vsub.f32 1.5, %v524
      %v526 = vmul.f32 %v521, %v525
      %v527 = vmul.f32 %v464, %v526
      %vm528 = vcmp.eq.f32.partialorder %v464, inf
      %v529 = vsel %vm528, %v464, %v527
      %vm530 = vcmp.eq.f32.partialorder %v464, 0.0
      %v531 = vand.u32 %v464, 2147483648
      %v532 = vsel %vm530, %v531, %v529
      %v533 = vrsqrt.pop %v465
      %v534 = vmul.f32 %v533, %v465
      %v535 = vmul.f32 %v534, %v533
      %v536 = vmul.f32 0.5, %v535
      %v537 = vsub.f32 1.5, %v536
      %v538 = vmul.f32 %v533, %v537
      %v539 = vmul.f32 %v465, %v538
      %vm540 = vcmp.eq.f32.partialorder %v465, inf
      %v541 = vsel %vm540, %v465, %v539
      %vm542 = vcmp.eq.f32.partialorder %v465, 0.0
      %v543 = vand.u32 %v465, 2147483648
      %v544 = vsel %vm542, %v543, %v541
      %v545 = vrsqrt.pop %v466
      %v546 = vmul.f32 %v545, %v466
      %v547 = vmul.f32 %v546, %v545
      %v548 = vmul.f32 0.5, %v547
      %v549 = vsub.f32 1.5, %v548
      %v550 = vmul.f32 %v545, %v549
      %v551 = vmul.f32 %v466, %v550
      %vm552 = vcmp.eq.f32.partialorder %v466, inf
      %v553 = vsel %vm552, %v466, %v551
      %vm554 = vcmp.eq.f32.partialorder %v466, 0.0
      %v555 = vand.u32 %v466, 2147483648
      %v556 = vsel %vm554, %v555, %v553
      %v557 = vrsqrt.pop %v467
      %v558 = vmul.f32 %v557, %v467
      %v559 = vmul.f32 %v558, %v557
      %v560 = vmul.f32 0.5, %v559
      %v561 = vsub.f32 1.5, %v560
      %v562 = vmul.f32 %v557, %v561
      %v563 = vmul.f32 %v467, %v562
      %vm564 = vcmp.eq.f32.partialorder %v467, inf
      %v565 = vsel %vm564, %v467, %v563
      %vm566 = vcmp.eq.f32.partialorder %v467, 0.0
      %v567 = vand.u32 %v467, 2147483648
      %v568 = vsel %vm566, %v567, %v565
      %v569 = vrsqrt.pop %v472
      %v570 = vmul.f32 %v569, %v472
      %v571 = vmul.f32 %v570, %v569
      %v572 = vmul.f32 0.5, %v571
      %v573 = vsub.f32 1.5, %v572
      %v574 = vmul.f32 %v569, %v573
      %v575 = vmul.f32 %v472, %v574
      %vm576 = vcmp.eq.f32.partialorder %v472, inf
      %v577 = vsel %vm576, %v472, %v575
      %vm578 = vcmp.eq.f32.partialorder %v472, 0.0
      %v579 = vand.u32 %v472, 2147483648
      %v580 = vsel %vm578, %v579, %v577
      %v582 = vrot.slane %v580, 1
      %v583 = vrot.slane %v580, 2
      %v584 = vrot.slane %v580, 3
      %v585 = vrot.slane %v580, 4
      %v586 = vrot.slane %v580, 5
      %v587 = vrot.slane %v580, 6
      %v588 = vrot.slane %v580, 7
      %v597 = vmul.f32 %v484, %v580
      %v598 = vmul.f32 %v496, %v582
      %v599 = vmul.f32 %v508, %v583
      %v600 = vmul.f32 %v520, %v584
      %v601 = vmul.f32 %v532, %v585
      %v602 = vmul.f32 %v544, %v586
      %v603 = vmul.f32 %v556, %v587
      %v604 = vmul.f32 %v568, %v588
      %v605 = vadd.f32 %v597, 1e-06
      %v606 = vadd.f32 %v598, 1e-06
      %v607 = vadd.f32 %v599, 1e-06
      %v608 = vadd.f32 %v600, 1e-06
      %v609 = vadd.f32 %v601, 1e-06
      %v610 = vadd.f32 %v602, 1e-06
      %v611 = vadd.f32 %v603, 1e-06
      %v612 = vadd.f32 %v604, 1e-06
      %v613 = vrcp.pop %v605
      %v614 = vmul.f32 %v605, %v613
      %v615 = vsub.f32 1.0, %v614
      %v616 = vmul.f32 %v613, %v615
      %v617 = vadd.f32 %v613, %v616
      %vm618 = vweird.f32 %v605
      %vm619 = vweird.f32 %v613
      %vm620 = vmor %vm618, %vm619
      %v621 = vsel %vm620, %v613, %v617
      %v622 = vand.u32 2147483647, %v605
      %vm623 = vcmp.eq.f32.partialorder %v622, 8.507059e+37
      %v624 = vand.u32 %v605, 2147483648
      %v625 = vor.u32 1.1754944e-38, %v624
      %v626 = vsel %vm623, %v625, %v621
      %v627 = vmul.f32 %v420, %v626
      %v628 = vrcp.pop %v606
      %v629 = vmul.f32 %v606, %v628
      %v630 = vsub.f32 1.0, %v629
      %v631 = vmul.f32 %v628, %v630
      %v632 = vadd.f32 %v628, %v631
      %vm633 = vweird.f32 %v606
      %vm634 = vweird.f32 %v628
      %vm635 = vmor %vm633, %vm634
      %v636 = vsel %vm635, %v628, %v632
      %v637 = vand.u32 2147483647, %v606
      %vm638 = vcmp.eq.f32.partialorder %v637, 8.507059e+37
      %v639 = vand.u32 %v606, 2147483648
      %v640 = vor.u32 1.1754944e-38, %v639
      %v641 = vsel %vm638, %v640, %v636
      %v642 = vmul.f32 %v421, %v641
      %v643 = vrcp.pop %v607
      %v644 = vmul.f32 %v607, %v643
      %v645 = vsub.f32 1.0, %v644
      %v646 = vmul.f32 %v643, %v645
      %v647 = vadd.f32 %v643, %v646
      %vm648 = vweird.f32 %v607
      %vm649 = vweird.f32 %v643
      %vm650 = vmor %vm648, %vm649
      %v651 = vsel %vm650, %v643, %v647
      %v652 = vand.u32 2147483647, %v607
      %vm653 = vcmp.eq.f32.partialorder %v652, 8.507059e+37
      %v654 = vand.u32 %v607, 2147483648
      %v655 = vor.u32 1.1754944e-38, %v654
      %v656 = vsel %vm653, %v655, %v651
      %v657 = vmul.f32 %v422, %v656
      %v658 = vrcp.pop %v608
      %v659 = vmul.f32 %v608, %v658
      %v660 = vsub.f32 1.0, %v659
      %v661 = vmul.f32 %v658, %v660
      %v662 = vadd.f32 %v658, %v661
      %vm663 = vweird.f32 %v608
      %vm664 = vweird.f32 %v658
      %vm665 = vmor %vm663, %vm664
      %v666 = vsel %vm665, %v658, %v662
      %v667 = vand.u32 2147483647, %v608
      %vm668 = vcmp.eq.f32.partialorder %v667, 8.507059e+37
      %v669 = vand.u32 %v608, 2147483648
      %v670 = vor.u32 1.1754944e-38, %v669
      %v671 = vsel %vm668, %v670, %v666
      %v672 = vmul.f32 %v423, %v671
      %v673 = vrcp.pop %v609
      %v674 = vmul.f32 %v609, %v673
      %v675 = vsub.f32 1.0, %v674
      %v676 = vmul.f32 %v673, %v675
      %v677 = vadd.f32 %v673, %v676
      %vm678 = vweird.f32 %v609
      %vm679 = vweird.f32 %v673
      %vm680 = vmor %vm678, %vm679
      %v681 = vsel %vm680, %v673, %v677
      %v682 = vand.u32 2147483647, %v609
      %vm683 = vcmp.eq.f32.partialorder %v682, 8.507059e+37
      %v684 = vand.u32 %v609, 2147483648
      %v685 = vor.u32 1.1754944e-38, %v684
      %v686 = vsel %vm683, %v685, %v681
      %v687 = vmul.f32 %v424, %v686
      %v688 = vrcp.pop %v610
      %v689 = vmul.f32 %v610, %v688
      %v690 = vsub.f32 1.0, %v689
      %v691 = vmul.f32 %v688, %v690
      %v692 = vadd.f32 %v688, %v691
      %vm693 = vweird.f32 %v610
      %vm694 = vweird.f32 %v688
      %vm695 = vmor %vm693, %vm694
      %v696 = vsel %vm695, %v688, %v692
      %v697 = vand.u32 2147483647, %v610
      %vm698 = vcmp.eq.f32.partialorder %v697, 8.507059e+37
      %v699 = vand.u32 %v610, 2147483648
      %v700 = vor.u32 1.1754944e-38, %v699
      %v701 = vsel %vm698, %v700, %v696
      %v702 = vmul.f32 %v425, %v701
      %v703 = vrcp.pop %v611
      %v704 = vmul.f32 %v611, %v703
      %v705 = vsub.f32 1.0, %v704
      %v706 = vmul.f32 %v703, %v705
      %v707 = vadd.f32 %v703, %v706
      %vm708 = vweird.f32 %v611
      %vm709 = vweird.f32 %v703
      %vm710 = vmor %vm708, %vm709
      %v711 = vsel %vm710, %v703, %v707
      %v712 = vand.u32 2147483647, %v611
      %vm713 = vcmp.eq.f32.partialorder %v712, 8.507059e+37
      %v714 = vand.u32 %v611, 2147483648
      %v715 = vor.u32 1.1754944e-38, %v714
      %v716 = vsel %vm713, %v715, %v711
      %v717 = vmul.f32 %v426, %v716
      %v718 = vrcp.pop %v612
      %v719 = vmul.f32 %v612, %v718
      %v720 = vsub.f32 1.0, %v719
      %v721 = vmul.f32 %v718, %v720
      %v722 = vadd.f32 %v718, %v721
      %vm723 = vweird.f32 %v612
      %vm724 = vweird.f32 %v718
      %vm725 = vmor %vm723, %vm724
      %v726 = vsel %vm725, %v718, %v722
      %v727 = vand.u32 2147483647, %v612
      %vm728 = vcmp.eq.f32.partialorder %v727, 8.507059e+37
      %v729 = vand.u32 %v612, 2147483648
      %v730 = vor.u32 1.1754944e-38, %v729
      %v731 = vsel %vm728, %v730, %v726
      %v732 = vmul.f32 %v427, %v731
      %v733 = vadd.f32 %v472, 1e-06
      %v735 = vrot.slane %v733, 1
      %v736 = vrot.slane %v733, 2
      %v737 = vrot.slane %v733, 3
      %v738 = vrot.slane %v733, 4
      %v739 = vrot.slane %v733, 5
      %v740 = vrot.slane %v733, 6
      %v741 = vrot.slane %v733, 7
      %v750 = vrcp.pop %v733
      %v751 = vmul.f32 %v733, %v750
      %v752 = vsub.f32 1.0, %v751
      %v753 = vmul.f32 %v750, %v752
      %v754 = vadd.f32 %v750, %v753
      %vm755 = vweird.f32 %v733
      %vm756 = vweird.f32 %v750
      %vm757 = vmor %vm755, %vm756
      %v758 = vsel %vm757, %v750, %v754
      %v759 = vand.u32 2147483647, %v733
      %vm760 = vcmp.eq.f32.partialorder %v759, 8.507059e+37
      %v761 = vand.u32 %v733, 2147483648
      %v762 = vor.u32 1.1754944e-38, %v761
      %v763 = vsel %vm760, %v762, %v758
      %v764 = vmul.f32 %v420, %v763
      %v765 = vrcp.pop %v735
      %v766 = vmul.f32 %v735, %v765
      %v767 = vsub.f32 1.0, %v766
      %v768 = vmul.f32 %v765, %v767
      %v769 = vadd.f32 %v765, %v768
      %vm770 = vweird.f32 %v735
      %vm771 = vweird.f32 %v765
      %vm772 = vmor %vm770, %vm771
      %v773 = vsel %vm772, %v765, %v769
      %v774 = vand.u32 2147483647, %v735
      %vm775 = vcmp.eq.f32.partialorder %v774, 8.507059e+37
      %v776 = vand.u32 %v735, 2147483648
      %v777 = vor.u32 1.1754944e-38, %v776
      %v778 = vsel %vm775, %v777, %v773
      %v779 = vmul.f32 %v421, %v778
      %v780 = vrcp.pop %v736
      %v781 = vmul.f32 %v736, %v780
      %v782 = vsub.f32 1.0, %v781
      %v783 = vmul.f32 %v780, %v782
      %v784 = vadd.f32 %v780, %v783
      %vm785 = vweird.f32 %v736
      %vm786 = vweird.f32 %v780
      %vm787 = vmor %vm785, %vm786
      %v788 = vsel %vm787, %v780, %v784
      %v789 = vand.u32 2147483647, %v736
      %vm790 = vcmp.eq.f32.partialorder %v789, 8.507059e+37
      %v791 = vand.u32 %v736, 2147483648
      %v792 = vor.u32 1.1754944e-38, %v791
      %v793 = vsel %vm790, %v792, %v788
      %v794 = vmul.f32 %v422, %v793
      %v795 = vrcp.pop %v737
      %v796 = vmul.f32 %v737, %v795
      %v797 = vsub.f32 1.0, %v796
      %v798 = vmul.f32 %v795, %v797
      %v799 = vadd.f32 %v795, %v798
      %vm800 = vweird.f32 %v737
      %vm801 = vweird.f32 %v795
      %vm802 = vmor %vm800, %vm801
      %v803 = vsel %vm802, %v795, %v799
      %v804 = vand.u32 2147483647, %v737
      %vm805 = vcmp.eq.f32.partialorder %v804, 8.507059e+37
      %v806 = vand.u32 %v737, 2147483648
      %v807 = vor.u32 1.1754944e-38, %v806
      %v808 = vsel %vm805, %v807, %v803
      %v809 = vmul.f32 %v423, %v808
      %v810 = vrcp.pop %v738
      %v811 = vmul.f32 %v738, %v810
      %v812 = vsub.f32 1.0, %v811
      %v813 = vmul.f32 %v810, %v812
      %v814 = vadd.f32 %v810, %v813
      %vm815 = vweird.f32 %v738
      %vm816 = vweird.f32 %v810
      %vm817 = vmor %vm815, %vm816
      %v818 = vsel %vm817, %v810, %v814
      %v819 = vand.u32 2147483647, %v738
      %vm820 = vcmp.eq.f32.partialorder %v819, 8.507059e+37
      %v821 = vand.u32 %v738, 2147483648
      %v822 = vor.u32 1.1754944e-38, %v821
      %v823 = vsel %vm820, %v822, %v818
      %v824 = vmul.f32 %v424, %v823
      %v825 = vrcp.pop %v739
      %v826 = vmul.f32 %v739, %v825
      %v827 = vsub.f32 1.0, %v826
      %v828 = vmul.f32 %v825, %v827
      %v829 = vadd.f32 %v825, %v828
      %vm830 = vweird.f32 %v739
      %vm831 = vweird.f32 %v825
      %vm832 = vmor %vm830, %vm831
      %v833 = vsel %vm832, %v825, %v829
      %v834 = vand.u32 2147483647, %v739
      %vm835 = vcmp.eq.f32.partialorder %v834, 8.507059e+37
      %v836 = vand.u32 %v739, 2147483648
      %v837 = vor.u32 1.1754944e-38, %v836
      %v838 = vsel %vm835, %v837, %v833
      %v839 = vmul.f32 %v425, %v838
      %v840 = vrcp.pop %v740
      %v841 = vmul.f32 %v740, %v840
      %v842 = vsub.f32 1.0, %v841
      %v843 = vmul.f32 %v840, %v842
      %v844 = vadd.f32 %v840, %v843
      %vm845 = vweird.f32 %v740
      %vm846 = vweird.f32 %v840
      %vm847 = vmor %vm845, %vm846
      %v848 = vsel %vm847, %v840, %v844
      %v849 = vand.u32 2147483647, %v740
      %vm850 = vcmp.eq.f32.partialorder %v849, 8.507059e+37
      %v851 = vand.u32 %v740, 2147483648
      %v852 = vor.u32 1.1754944e-38, %v851
      %v853 = vsel %vm850, %v852, %v848
      %v854 = vmul.f32 %v426, %v853
      %v855 = vrcp.pop %v741
      %v856 = vmul.f32 %v741, %v855
      %v857 = vsub.f32 1.0, %v856
      %v858 = vmul.f32 %v855, %v857
      %v859 = vadd.f32 %v855, %v858
      %vm860 = vweird.f32 %v741
      %vm861 = vweird.f32 %v855
      %vm862 = vmor %vm860, %vm861
      %v863 = vsel %vm862, %v855, %v859
      %v864 = vand.u32 2147483647, %v741
      %vm865 = vcmp.eq.f32.partialorder %v864, 8.507059e+37
      %v866 = vand.u32 %v741, 2147483648
      %v867 = vor.u32 1.1754944e-38, %v866
      %v868 = vsel %vm865, %v867, %v863
      %v869 = vmul.f32 %v427, %v868
      %v870 = vsub.f32 1.0, %v627
      %v871 = vsub.f32 1.0, %v642
      %v872 = vsub.f32 1.0, %v657
      %v873 = vsub.f32 1.0, %v672
      %v874 = vsub.f32 1.0, %v687
      %v875 = vsub.f32 1.0, %v702
      %v876 = vsub.f32 1.0, %v717
      %v877 = vsub.f32 1.0, %v732
      %v878 = vmul.f32 %v870, 0.5
      %v879 = vmul.f32 %v871, 0.5
      %v880 = vmul.f32 %v872, 0.5
      %v881 = vmul.f32 %v873, 0.5
      %v882 = vmul.f32 %v874, 0.5
      %v883 = vmul.f32 %v875, 0.5
      %v884 = vmul.f32 %v876, 0.5
      %v885 = vmul.f32 %v877, 0.5
      %v886 = vmul.f32 %v878, %v764
      %v887 = vmul.f32 %v879, %v779
      %v888 = vmul.f32 %v880, %v794
      %v889 = vmul.f32 %v881, %v809
      %v890 = vmul.f32 %v882, %v824
      %v891 = vmul.f32 %v883, %v839
      %v892 = vmul.f32 %v884, %v854
      %v893 = vmul.f32 %v885, %v869
      %v894 = vmul.f32 %v886, %v252
      %v895 = vmul.f32 %v887, %v341
      %v896 = vmul.f32 %v888, %v342
      %v897 = vmul.f32 %v889, %v343
      %v898 = vmul.f32 %v890, %v344
      %v899 = vmul.f32 %v891, %v345
      %v900 = vmul.f32 %v892, %v346
      %v901 = vmul.f32 %v893, %v347
      %v902 = vsub.f32 %v176, %v894
      %v903 = vsub.f32 %v177, %v895
      %v904 = vsub.f32 %v178, %v896
      %v905 = vsub.f32 %v179, %v897
      %v906 = vsub.f32 %v180, %v898
      %v907 = vsub.f32 %v181, %v899
      %v908 = vsub.f32 %v182, %v900
      %v909 = vsub.f32 %v183, %v901
      %vm910 = vcmask 122880
      %911 = vst.msk [vmem:[%s174] sm:$0x1] %vm910, %v902
      %912 = vst.msk [vmem:[%s174 + $0x4] sm:$0x1] %vm910, %v903
      %913 = vst.msk [vmem:[%s174 + $0x8] sm:$0x1] %vm910, %v904
      %914 = vst.msk [vmem:[%s174 + $0xc] sm:$0x1] %vm910, %v905
      %915 = vst.msk [vmem:[%s174 + $0x10] sm:$0x1] %vm910, %v906
      %916 = vst.msk [vmem:[%s174 + $0x14] sm:$0x1] %vm910, %v907
      %917 = vst.msk [vmem:[%s174 + $0x18] sm:$0x1] %vm910, %v908
      %918 = vst.msk [vmem:[%s174 + $0x1c] sm:$0x1] %vm910, %v909
      %v919 = vmul.f32 %v886, %v295
      %v920 = vmul.f32 %v887, %v365
      %v921 = vmul.f32 %v888, %v366
      %v922 = vmul.f32 %v889, %v367
      %v923 = vmul.f32 %v890, %v368
      %v924 = vmul.f32 %v891, %v369
      %v925 = vmul.f32 %v892, %v370
      %v926 = vmul.f32 %v893, %v371
      %v927 = vsub.f32 %v184, %v919
      %v928 = vsub.f32 %v185, %v920
      %v929 = vsub.f32 %v186, %v921
      %v930 = vsub.f32 %v187, %v922
      %v931 = vsub.f32 %v188, %v923
      %v932 = vsub.f32 %v189, %v924
      %v933 = vsub.f32 %v190, %v925
      %v934 = vsub.f32 %v191, %v926
      %935 = vst.msk [vmem:[%s174 + $0x1] sm:$0x1] %vm910, %v927
      %936 = vst.msk [vmem:[%s174 + $0x5] sm:$0x1] %vm910, %v928
      %937 = vst.msk [vmem:[%s174 + $0x9] sm:$0x1] %vm910, %v929
      %938 = vst.msk [vmem:[%s174 + $0xd] sm:$0x1] %vm910, %v930
      %939 = vst.msk [vmem:[%s174 + $0x11] sm:$0x1] %vm910, %v931
      %940 = vst.msk [vmem:[%s174 + $0x15] sm:$0x1] %vm910, %v932
      %941 = vst.msk [vmem:[%s174 + $0x19] sm:$0x1] %vm910, %v933
      %942 = vst.msk [vmem:[%s174 + $0x1d] sm:$0x1] %vm910, %v934
      %v943 = vmul.f32 %v886, %v338
      %v944 = vmul.f32 %v887, %v397
      %v945 = vmul.f32 %v888, %v398
      %v946 = vmul.f32 %v889, %v399
      %v947 = vmul.f32 %v890, %v400
      %v948 = vmul.f32 %v891, %v401
      %v949 = vmul.f32 %v892, %v402
      %v950 = vmul.f32 %v893, %v403
      %v951 = vsub.f32 %v192, %v943
      %v952 = vsub.f32 %v193, %v944
      %v953 = vsub.f32 %v194, %v945
      %v954 = vsub.f32 %v195, %v946
      %v955 = vsub.f32 %v196, %v947
      %v956 = vsub.f32 %v197, %v948
      %v957 = vsub.f32 %v198, %v949
      %v958 = vsub.f32 %v199, %v950
      %959 = vst.msk [vmem:[%s174 + $0x2] sm:$0x1] %vm910, %v951
      %960 = vst.msk [vmem:[%s174 + $0x6] sm:$0x1] %vm910, %v952
      %961 = vst.msk [vmem:[%s174 + $0xa] sm:$0x1] %vm910, %v953
      %962 = vst.msk [vmem:[%s174 + $0xe] sm:$0x1] %vm910, %v954
      %963 = vst.msk [vmem:[%s174 + $0x12] sm:$0x1] %vm910, %v955
      %964 = vst.msk [vmem:[%s174 + $0x16] sm:$0x1] %vm910, %v956
      %965 = vst.msk [vmem:[%s174 + $0x1a] sm:$0x1] %vm910, %v957
      %966 = vst.msk [vmem:[%s174 + $0x1e] sm:$0x1] %vm910, %v958
      %p967 = scmp.lt.s32.totalorder %s17, 1
      %s968 = scalar_select %p967, %s17, 1
      %p969 = scmp.lt.s32.totalorder %s18, 0
      %s970 = scalar_select %p969, %s18, 0
      %s971 = smul.addr %s968, 8
      %s972 = sadd.s32 %s970, %s971
      %s973 = smul.addr %s972, 4
      %s974 = scalar_lea.vmem %s2, %s973
      // Predicated region
      $region29: #{tpu_custom_call.1} parent=27 // pred_check
        %p975 = pneg %p94
      $region30: #{tpu_custom_call.1} parent=27 // pred_check_branch
        %977 = sbr.rel (%p975) target = $region32
      $region31: #{tpu_custom_call.1} parent=27 // pred_region
        _
      $region32: #{tpu_custom_call.1} parent=27 // pred_fallthru
        _
    $region28: #{tpu_custom_call.1} parent=5 // pred_fallthru
      _
    %p978 = scmp.le.s32.totalorder 2, %s8
    // Predicated region
    $region33: #{tpu_custom_call.1} parent=5 // pred_check
      %p979 = pneg %p978
    $region34: #{tpu_custom_call.1} parent=5 // pred_check_branch
      %981 = sbr.rel (%p979) target = $region36
    $region35: #{tpu_custom_call.1} parent=5 // pred_region
      %s982 = ssub.s32 %s8, 2
      // Predicated region
      $region37: #{tpu_custom_call.1} parent=35 // pred_check
        %p983 = pneg %p100
      $region38: #{tpu_custom_call.1} parent=35 // pred_check_branch
        %985 = sbr.rel (%p983) target = $region40
      $region39: #{tpu_custom_call.1} parent=35 // pred_region
        %p986 = scmp.lt.s32.totalorder %s19, 1
        %s987 = scalar_select %p986, %s19, 1
        %p988 = scmp.lt.s32.totalorder %s20, 0
        %s989 = scalar_select %p988, %s20, 0
        %s990 = smul.addr %s987, 8
        %s991 = sadd.s32 %s989, %s990
        %s992 = smul.addr %s991, 4
        %s993 = scalar_lea.vmem %s2, %s992
      $region40: #{tpu_custom_call.1} parent=35 // pred_fallthru
        _
    $region36: #{tpu_custom_call.1} parent=5 // pred_fallthru
      _
  $region6: #{tpu_custom_call.1} parent=0 // loop_footer
    %s12 = sadd.s32 1, %s8
  $region7: #{tpu_custom_call.1} parent=0 // loop_footer_branch
    %7 = sbr.rel target = $region3
  $region8: #{tpu_custom_call.1} parent=0 // loop_exit
    _

</llo_original>
